<compile_context>
chip_gen: v7x
topology: tpu7x:2x2x1
jax: 0.10.0
libtpu: 0.0.40
codegen_flags: <defaults>
</compile_context>

<pallas_src>
import jax
import jax.numpy as jnp
from jax import lax
from jax.experimental import pallas as pl
from jax.experimental.pallas import tpu as pltpu


def _round_up(a, m):
    return ((a + m - 1) // m) * m


def skipgram_forward(x, emb_i, emb_o, *, tb=None):
    """x: int [B, 1+1+neg_k]; emb_i/emb_o: [V, D].  Returns float32 [B, 1, K]."""
    B, C = x.shape
    K = C - 1                      # 1 positive + neg_k negatives
    V, D = emb_i.shape
    assert emb_o.shape == (V, D)

    # Batch tile: one full-extent tile for small B; otherwise 512-row tiles
    # (multiple of 128 -> legal, lane-dense [K, tb] output blocks, and >= 2
    # grid steps so the "parallel" axis actually feeds both v7x TensorCores).
    if tb is None:
        tb = _round_up(B, 8) if B <= 512 else 512
    tb = max(tb, 8)
    num_tiles = pl.cdiv(B, tb)
    assert num_tiles == 1 or tb % 128 == 0, "multi-tile grids need tb % 128 == 0"
    B_pad = num_tiles * tb

    # Pad the index array (padding rows gather row 0 -> valid data, sliced off
    # later) and flatten to 1D so the SMEM copy of the indices stays compact.
    x = x.astype(jnp.int32)
    if B_pad != B:
        x = jnp.concatenate([x, jnp.zeros((B_pad - B, C), jnp.int32)], axis=0)
    x_flat = x.reshape(-1)         # [B_pad * C] -> SMEM via scalar prefetch

    gather_unroll = tb if tb <= 8 else 8

    def kernel(x_ref, emb_i_ref, emb_o_ref, out_ref, center_buf, ctx_buf):
        # x_ref:     SMEM (B_pad*C,) int32  -- all lookup indices
        # emb_i_ref: VMEM (V, D)            -- resident across grid steps
        # emb_o_ref: VMEM (V, D)            -- resident across grid steps
        # out_ref:   VMEM (K, tb)           -- lane-dense output block
        it = pl.program_id(0)
        tile_base = it * tb * C

        # Row gather straight from the VMEM-resident tables (no HBM DMAs).
        def gather(i, carry):
            base = tile_base + i * C
            center_buf[pl.ds(i, 1), :] = emb_i_ref[pl.ds(x_ref[base], 1), :]
            for k in range(K):                              # K is small & static
                ctx_buf[pl.ds(k * tb + i, 1), :] = (
                    emb_o_ref[pl.ds(x_ref[base + 1 + k], 1), :])
            return carry

        lax.fori_loop(0, tb, gather, 0, unroll=gather_unroll)

        center = center_buf[...].astype(jnp.float32)               # [TB, D]
        ctx = ctx_buf[...].astype(jnp.float32).reshape(K, tb, D)   # [K, TB, D]

        # Batched dot over D on the VPU (multiply) + XLU (lane reduction).
        # TODO(synk): with D < 128 only D/128 lanes are active here; a
        # transposed (D-on-sublane, tb-on-lane) gather layout would make the
        # contraction lane-dense (secondary to the DMA elimination above).
        s = jnp.sum(ctx * center[None, :, :], axis=-1)             # [K, TB]

        # y = logsigmoid(-s), numerically stable:
        #   logsigmoid(z) = min(z, 0) - log1p(exp(-|z|))
        z = -s
        y = jnp.minimum(z, 0.0) - jnp.log1p(jnp.exp(-jnp.abs(z)))
        out_ref[...] = y.astype(out_ref.dtype)                     # lane-dense [K, TB]

    # VMEM budget: resident tables (x2 for the pipeline's default double
    # buffering), gather scratch, and the double-buffered output blocks.
    table_bytes = V * D * (emb_i.dtype.itemsize + emb_o.dtype.itemsize)
    scratch_bytes = (1 + K) * tb * D * emb_i.dtype.itemsize
    out_bytes = 2 * K * tb * 4
    vmem_est = 2 * table_bytes + scratch_bytes + out_bytes + (4 << 20)
    vmem_limit = int(min(max(vmem_est, 32 << 20), 128 << 20))

    out_t = pl.pallas_call(
        kernel,
        out_shape=jax.ShapeDtypeStruct((K, B_pad), jnp.float32),
        grid_spec=pltpu.PrefetchScalarGridSpec(
            num_scalar_prefetch=1,                     # x_flat -> SMEM
            grid=(num_tiles,),
            in_specs=[
                # Full-table blocks with a constant index_map: fetched once,
                # resident in VMEM for every batch tile (no per-row HBM DMAs).
                pl.BlockSpec((V, D), lambda i, xs: (0, 0)),
                pl.BlockSpec((V, D), lambda i, xs: (0, 0)),
            ],
            out_specs=pl.BlockSpec((K, tb), lambda i, xs: (0, i)),
            scratch_shapes=[
                pltpu.VMEM((tb, D), emb_i.dtype),        # gathered center rows
                pltpu.VMEM((K * tb, D), emb_o.dtype),    # gathered context rows
            ],
        ),
        compiler_params=pltpu.CompilerParams(
            dimension_semantics=("parallel",),           # batch tiles -> both v7x TCs
            vmem_limit_bytes=vmem_limit,
        ),
    )(x_flat, emb_i, emb_o)

    # [K, B_pad] lane-dense kernel output -> PyTorch layout [B, 1, K].
    return out_t.T[:B][:, None, :]


def reference_forward(x, emb_i, emb_o):
    center = emb_i[x[:, 0:1]]                     # [B, 1, D]
    context = emb_o[x[:, 1:]]                     # [B, K, D]
    y = -jnp.einsum("bqd,bkd->bqk", center, context)
    return jax.nn.log_sigmoid(y)


if __name__ == "__main__":
    key = jax.random.PRNGKey(0)
    k_i, k_o, k_x = jax.random.split(key, 3)

    token_num = 50
    emb_dim = 32
    vocab = token_num + 10            # matches nn.Embedding(token_num + 10, ...)
    B = 2
    neg_k = 3                         # x = [xi, xo, xn1..xn3] -> [B, 5]

    # nn.Embedding default init: N(0, 1)
    emb_i = jax.random.normal(k_i, (vocab, emb_dim), dtype=jnp.float32)
    emb_o = jax.random.normal(k_o, (vocab, emb_dim), dtype=jnp.float32)

    x = jax.random.randint(k_x, (B, 2 + neg_k), 0, vocab, dtype=jnp.int32)

    y = skipgram_forward(x, emb_i, emb_o)
    y = jax.block_until_ready(y)

    y_ref = reference_forward(x, emb_i, emb_o)
    assert y.shape == (B, 1, 1 + neg_k)
    assert jnp.allclose(y, y_ref, atol=1e-5, rtol=1e-5)

    print("KERNEL_OK")
</pallas_src>

<mosaic_0001>
module attributes {stable_mosaic.version = 11 : i64} {
  func.func @kernel(%arg0: i32, %arg1: memref<40xi32, #tpu.memory_space<smem>>, %arg2: memref<60x32xf32, #tpu.memory_space<vmem>>, %arg3: memref<60x32xf32, #tpu.memory_space<vmem>>, %arg4: memref<4x8xf32, #tpu.memory_space<vmem>>, %arg5: memref<8x32xf32, #tpu.memory_space<vmem>>, %arg6: memref<32x32xf32, #tpu.memory_space<vmem>>) attributes {dimension_semantics = [#tpu.dimension_semantics<parallel>], iteration_bounds = array<i64: 1>, scalar_prefetch = 1 : i64, scratch_operands = 2 : i64, tpu.core_type = #tpu.core_type<tc>, window_params = [{pipeline_mode = #tpu.pipeline_mode<synchronous>, transform_indices = @transform_0, window_bounds = array<i64: 60, 32>}, {pipeline_mode = #tpu.pipeline_mode<synchronous>, transform_indices = @transform_1, window_bounds = array<i64: 60, 32>}, {transform_indices = @transform_2, window_bounds = array<i64: 4, 8>}]} {
    %c8_i32 = arith.constant 8 : i32
    %0 = arith.muli %arg0, %c8_i32 : i32
    %c5_i32 = arith.constant 5 : i32
    %1 = arith.muli %0, %c5_i32 : i32
    %c0_i32 = arith.constant 0 : i32
    %c5_i32_0 = arith.constant 5 : i32
    %2 = arith.muli %c0_i32, %c5_i32_0 : i32
    %3 = arith.addi %1, %2 : i32
    %4 = arith.index_cast %3 : i32 to index
    %5 = memref.load %arg1[%4] : memref<40xi32, #tpu.memory_space<smem>>
    %6 = arith.index_cast %5 : i32 to index
    %c0 = arith.constant 0 : index
    %7 = vector.load %arg2[%6, %c0] : memref<60x32xf32, #tpu.memory_space<vmem>>, vector<1x32xf32>
    %8 = arith.index_cast %c0_i32 : i32 to index
    %c0_1 = arith.constant 0 : index
    %9 = vector.load %arg5[%8, %c0_1] : memref<8x32xf32, #tpu.memory_space<vmem>>, vector<1x32xf32>
    tpu.vector_store %arg5[%8, %c0_1], %7 {strides = array<i32>} : memref<8x32xf32, #tpu.memory_space<vmem>>, vector<1x32xf32>,
    %c1_i32 = arith.constant 1 : i32
    %10 = arith.addi %3, %c1_i32 : i32
    %c0_i32_2 = arith.constant 0 : i32
    %11 = arith.addi %10, %c0_i32_2 : i32
    %12 = arith.index_cast %11 : i32 to index
    %13 = memref.load %arg1[%12] : memref<40xi32, #tpu.memory_space<smem>>
    %14 = arith.index_cast %13 : i32 to index
    %c0_3 = arith.constant 0 : index
    %15 = vector.load %arg3[%14, %c0_3] : memref<60x32xf32, #tpu.memory_space<vmem>>, vector<1x32xf32>
    %c0_i32_4 = arith.constant 0 : i32
    %16 = arith.addi %c0_i32_4, %c0_i32 : i32
    %17 = arith.index_cast %16 : i32 to index
    %c0_5 = arith.constant 0 : index
    %18 = vector.load %arg6[%17, %c0_5] : memref<32x32xf32, #tpu.memory_space<vmem>>, vector<1x32xf32>
    tpu.vector_store %arg6[%17, %c0_5], %15 {strides = array<i32>} : memref<32x32xf32, #tpu.memory_space<vmem>>, vector<1x32xf32>,
    %c1_i32_6 = arith.constant 1 : i32
    %19 = arith.addi %3, %c1_i32_6 : i32
    %c1_i32_7 = arith.constant 1 : i32
    %20 = arith.addi %19, %c1_i32_7 : i32
    %21 = arith.index_cast %20 : i32 to index
    %22 = memref.load %arg1[%21] : memref<40xi32, #tpu.memory_space<smem>>
    %23 = arith.index_cast %22 : i32 to index
    %c0_8 = arith.constant 0 : index
    %24 = vector.load %arg3[%23, %c0_8] : memref<60x32xf32, #tpu.memory_space<vmem>>, vector<1x32xf32>
    %c8_i32_9 = arith.constant 8 : i32
    %25 = arith.addi %c8_i32_9, %c0_i32 : i32
    %26 = arith.index_cast %25 : i32 to index
    %c0_10 = arith.constant 0 : index
    %27 = vector.load %arg6[%26, %c0_10] : memref<32x32xf32, #tpu.memory_space<vmem>>, vector<1x32xf32>
    tpu.vector_store %arg6[%26, %c0_10], %24 {strides = array<i32>} : memref<32x32xf32, #tpu.memory_space<vmem>>, vector<1x32xf32>,
    %c1_i32_11 = arith.constant 1 : i32
    %28 = arith.addi %3, %c1_i32_11 : i32
    %c2_i32 = arith.constant 2 : i32
    %29 = arith.addi %28, %c2_i32 : i32
    %30 = arith.index_cast %29 : i32 to index
    %31 = memref.load %arg1[%30] : memref<40xi32, #tpu.memory_space<smem>>
    %32 = arith.index_cast %31 : i32 to index
    %c0_12 = arith.constant 0 : index
    %33 = vector.load %arg3[%32, %c0_12] : memref<60x32xf32, #tpu.memory_space<vmem>>, vector<1x32xf32>
    %c16_i32 = arith.constant 16 : i32
    %34 = arith.addi %c16_i32, %c0_i32 : i32
    %35 = arith.index_cast %34 : i32 to index
    %c0_13 = arith.constant 0 : index
    %36 = vector.load %arg6[%35, %c0_13] : memref<32x32xf32, #tpu.memory_space<vmem>>, vector<1x32xf32>
    tpu.vector_store %arg6[%35, %c0_13], %33 {strides = array<i32>} : memref<32x32xf32, #tpu.memory_space<vmem>>, vector<1x32xf32>,
    %c1_i32_14 = arith.constant 1 : i32
    %37 = arith.addi %3, %c1_i32_14 : i32
    %c3_i32 = arith.constant 3 : i32
    %38 = arith.addi %37, %c3_i32 : i32
    %39 = arith.index_cast %38 : i32 to index
    %40 = memref.load %arg1[%39] : memref<40xi32, #tpu.memory_space<smem>>
    %41 = arith.index_cast %40 : i32 to index
    %c0_15 = arith.constant 0 : index
    %42 = vector.load %arg3[%41, %c0_15] : memref<60x32xf32, #tpu.memory_space<vmem>>, vector<1x32xf32>
    %c24_i32 = arith.constant 24 : i32
    %43 = arith.addi %c24_i32, %c0_i32 : i32
    %44 = arith.index_cast %43 : i32 to index
    %c0_16 = arith.constant 0 : index
    %45 = vector.load %arg6[%44, %c0_16] : memref<32x32xf32, #tpu.memory_space<vmem>>, vector<1x32xf32>
    tpu.vector_store %arg6[%44, %c0_16], %42 {strides = array<i32>} : memref<32x32xf32, #tpu.memory_space<vmem>>, vector<1x32xf32>,
    %c1_i32_17 = arith.constant 1 : i32
    %c5_i32_18 = arith.constant 5 : i32
    %46 = arith.muli %c1_i32_17, %c5_i32_18 : i32
    %47 = arith.addi %1, %46 : i32
    %48 = arith.index_cast %47 : i32 to index
    %49 = memref.load %arg1[%48] : memref<40xi32, #tpu.memory_space<smem>>
    %50 = arith.index_cast %49 : i32 to index
    %c0_19 = arith.constant 0 : index
    %51 = vector.load %arg2[%50, %c0_19] : memref<60x32xf32, #tpu.memory_space<vmem>>, vector<1x32xf32>
    %52 = arith.index_cast %c1_i32_17 : i32 to index
    %c0_20 = arith.constant 0 : index
    %53 = vector.load %arg5[%52, %c0_20] : memref<8x32xf32, #tpu.memory_space<vmem>>, vector<1x32xf32>
    tpu.vector_store %arg5[%52, %c0_20], %51 {strides = array<i32>} : memref<8x32xf32, #tpu.memory_space<vmem>>, vector<1x32xf32>,
    %c1_i32_21 = arith.constant 1 : i32
    %54 = arith.addi %47, %c1_i32_21 : i32
    %c0_i32_22 = arith.constant 0 : i32
    %55 = arith.addi %54, %c0_i32_22 : i32
    %56 = arith.index_cast %55 : i32 to index
    %57 = memref.load %arg1[%56] : memref<40xi32, #tpu.memory_space<smem>>
    %58 = arith.index_cast %57 : i32 to index
    %c0_23 = arith.constant 0 : index
    %59 = vector.load %arg3[%58, %c0_23] : memref<60x32xf32, #tpu.memory_space<vmem>>, vector<1x32xf32>
    %c0_i32_24 = arith.constant 0 : i32
    %60 = arith.addi %c0_i32_24, %c1_i32_17 : i32
    %61 = arith.index_cast %60 : i32 to index
    %c0_25 = arith.constant 0 : index
    %62 = vector.load %arg6[%61, %c0_25] : memref<32x32xf32, #tpu.memory_space<vmem>>, vector<1x32xf32>
    tpu.vector_store %arg6[%61, %c0_25], %59 {strides = array<i32>} : memref<32x32xf32, #tpu.memory_space<vmem>>, vector<1x32xf32>,
    %c1_i32_26 = arith.constant 1 : i32
    %63 = arith.addi %47, %c1_i32_26 : i32
    %c1_i32_27 = arith.constant 1 : i32
    %64 = arith.addi %63, %c1_i32_27 : i32
    %65 = arith.index_cast %64 : i32 to index
    %66 = memref.load %arg1[%65] : memref<40xi32, #tpu.memory_space<smem>>
    %67 = arith.index_cast %66 : i32 to index
    %c0_28 = arith.constant 0 : index
    %68 = vector.load %arg3[%67, %c0_28] : memref<60x32xf32, #tpu.memory_space<vmem>>, vector<1x32xf32>
    %c8_i32_29 = arith.constant 8 : i32
    %69 = arith.addi %c8_i32_29, %c1_i32_17 : i32
    %70 = arith.index_cast %69 : i32 to index
    %c0_30 = arith.constant 0 : index
    %71 = vector.load %arg6[%70, %c0_30] : memref<32x32xf32, #tpu.memory_space<vmem>>, vector<1x32xf32>
    tpu.vector_store %arg6[%70, %c0_30], %68 {strides = array<i32>} : memref<32x32xf32, #tpu.memory_space<vmem>>, vector<1x32xf32>,
    %c1_i32_31 = arith.constant 1 : i32
    %72 = arith.addi %47, %c1_i32_31 : i32
    %c2_i32_32 = arith.constant 2 : i32
    %73 = arith.addi %72, %c2_i32_32 : i32
    %74 = arith.index_cast %73 : i32 to index
    %75 = memref.load %arg1[%74] : memref<40xi32, #tpu.memory_space<smem>>
    %76 = arith.index_cast %75 : i32 to index
    %c0_33 = arith.constant 0 : index
    %77 = vector.load %arg3[%76, %c0_33] : memref<60x32xf32, #tpu.memory_space<vmem>>, vector<1x32xf32>
    %c16_i32_34 = arith.constant 16 : i32
    %78 = arith.addi %c16_i32_34, %c1_i32_17 : i32
    %79 = arith.index_cast %78 : i32 to index
    %c0_35 = arith.constant 0 : index
    %80 = vector.load %arg6[%79, %c0_35] : memref<32x32xf32, #tpu.memory_space<vmem>>, vector<1x32xf32>
    tpu.vector_store %arg6[%79, %c0_35], %77 {strides = array<i32>} : memref<32x32xf32, #tpu.memory_space<vmem>>, vector<1x32xf32>,
    %c1_i32_36 = arith.constant 1 : i32
    %81 = arith.addi %47, %c1_i32_36 : i32
    %c3_i32_37 = arith.constant 3 : i32
    %82 = arith.addi %81, %c3_i32_37 : i32
    %83 = arith.index_cast %82 : i32 to index
    %84 = memref.load %arg1[%83] : memref<40xi32, #tpu.memory_space<smem>>
    %85 = arith.index_cast %84 : i32 to index
    %c0_38 = arith.constant 0 : index
    %86 = vector.load %arg3[%85, %c0_38] : memref<60x32xf32, #tpu.memory_space<vmem>>, vector<1x32xf32>
    %c24_i32_39 = arith.constant 24 : i32
    %87 = arith.addi %c24_i32_39, %c1_i32_17 : i32
    %88 = arith.index_cast %87 : i32 to index
    %c0_40 = arith.constant 0 : index
    %89 = vector.load %arg6[%88, %c0_40] : memref<32x32xf32, #tpu.memory_space<vmem>>, vector<1x32xf32>
    tpu.vector_store %arg6[%88, %c0_40], %86 {strides = array<i32>} : memref<32x32xf32, #tpu.memory_space<vmem>>, vector<1x32xf32>,
    %c2_i32_41 = arith.constant 2 : i32
    %c5_i32_42 = arith.constant 5 : i32
    %90 = arith.muli %c2_i32_41, %c5_i32_42 : i32
    %91 = arith.addi %1, %90 : i32
    %92 = arith.index_cast %91 : i32 to index
    %93 = memref.load %arg1[%92] : memref<40xi32, #tpu.memory_space<smem>>
    %94 = arith.index_cast %93 : i32 to index
    %c0_43 = arith.constant 0 : index
    %95 = vector.load %arg2[%94, %c0_43] : memref<60x32xf32, #tpu.memory_space<vmem>>, vector<1x32xf32>
    %96 = arith.index_cast %c2_i32_41 : i32 to index
    %c0_44 = arith.constant 0 : index
    %97 = vector.load %arg5[%96, %c0_44] : memref<8x32xf32, #tpu.memory_space<vmem>>, vector<1x32xf32>
    tpu.vector_store %arg5[%96, %c0_44], %95 {strides = array<i32>} : memref<8x32xf32, #tpu.memory_space<vmem>>, vector<1x32xf32>,
    %c1_i32_45 = arith.constant 1 : i32
    %98 = arith.addi %91, %c1_i32_45 : i32
    %c0_i32_46 = arith.constant 0 : i32
    %99 = arith.addi %98, %c0_i32_46 : i32
    %100 = arith.index_cast %99 : i32 to index
    %101 = memref.load %arg1[%100] : memref<40xi32, #tpu.memory_space<smem>>
    %102 = arith.index_cast %101 : i32 to index
    %c0_47 = arith.constant 0 : index
    %103 = vector.load %arg3[%102, %c0_47] : memref<60x32xf32, #tpu.memory_space<vmem>>, vector<1x32xf32>
    %c0_i32_48 = arith.constant 0 : i32
    %104 = arith.addi %c0_i32_48, %c2_i32_41 : i32
    %105 = arith.index_cast %104 : i32 to index
    %c0_49 = arith.constant 0 : index
    %106 = vector.load %arg6[%105, %c0_49] : memref<32x32xf32, #tpu.memory_space<vmem>>, vector<1x32xf32>
    tpu.vector_store %arg6[%105, %c0_49], %103 {strides = array<i32>} : memref<32x32xf32, #tpu.memory_space<vmem>>, vector<1x32xf32>,
    %c1_i32_50 = arith.constant 1 : i32
    %107 = arith.addi %91, %c1_i32_50 : i32
    %c1_i32_51 = arith.constant 1 : i32
    %108 = arith.addi %107, %c1_i32_51 : i32
    %109 = arith.index_cast %108 : i32 to index
    %110 = memref.load %arg1[%109] : memref<40xi32, #tpu.memory_space<smem>>
    %111 = arith.index_cast %110 : i32 to index
    %c0_52 = arith.constant 0 : index
    %112 = vector.load %arg3[%111, %c0_52] : memref<60x32xf32, #tpu.memory_space<vmem>>, vector<1x32xf32>
    %c8_i32_53 = arith.constant 8 : i32
    %113 = arith.addi %c8_i32_53, %c2_i32_41 : i32
    %114 = arith.index_cast %113 : i32 to index
    %c0_54 = arith.constant 0 : index
    %115 = vector.load %arg6[%114, %c0_54] : memref<32x32xf32, #tpu.memory_space<vmem>>, vector<1x32xf32>
    tpu.vector_store %arg6[%114, %c0_54], %112 {strides = array<i32>} : memref<32x32xf32, #tpu.memory_space<vmem>>, vector<1x32xf32>,
    %c1_i32_55 = arith.constant 1 : i32
    %116 = arith.addi %91, %c1_i32_55 : i32
    %c2_i32_56 = arith.constant 2 : i32
    %117 = arith.addi %116, %c2_i32_56 : i32
    %118 = arith.index_cast %117 : i32 to index
    %119 = memref.load %arg1[%118] : memref<40xi32, #tpu.memory_space<smem>>
    %120 = arith.index_cast %119 : i32 to index
    %c0_57 = arith.constant 0 : index
    %121 = vector.load %arg3[%120, %c0_57] : memref<60x32xf32, #tpu.memory_space<vmem>>, vector<1x32xf32>
    %c16_i32_58 = arith.constant 16 : i32
    %122 = arith.addi %c16_i32_58, %c2_i32_41 : i32
    %123 = arith.index_cast %122 : i32 to index
    %c0_59 = arith.constant 0 : index
    %124 = vector.load %arg6[%123, %c0_59] : memref<32x32xf32, #tpu.memory_space<vmem>>, vector<1x32xf32>
    tpu.vector_store %arg6[%123, %c0_59], %121 {strides = array<i32>} : memref<32x32xf32, #tpu.memory_space<vmem>>, vector<1x32xf32>,
    %c1_i32_60 = arith.constant 1 : i32
    %125 = arith.addi %91, %c1_i32_60 : i32
    %c3_i32_61 = arith.constant 3 : i32
    %126 = arith.addi %125, %c3_i32_61 : i32
    %127 = arith.index_cast %126 : i32 to index
    %128 = memref.load %arg1[%127] : memref<40xi32, #tpu.memory_space<smem>>
    %129 = arith.index_cast %128 : i32 to index
    %c0_62 = arith.constant 0 : index
    %130 = vector.load %arg3[%129, %c0_62] : memref<60x32xf32, #tpu.memory_space<vmem>>, vector<1x32xf32>
    %c24_i32_63 = arith.constant 24 : i32
    %131 = arith.addi %c24_i32_63, %c2_i32_41 : i32
    %132 = arith.index_cast %131 : i32 to index
    %c0_64 = arith.constant 0 : index
    %133 = vector.load %arg6[%132, %c0_64] : memref<32x32xf32, #tpu.memory_space<vmem>>, vector<1x32xf32>
    tpu.vector_store %arg6[%132, %c0_64], %130 {strides = array<i32>} : memref<32x32xf32, #tpu.memory_space<vmem>>, vector<1x32xf32>,
    %c3_i32_65 = arith.constant 3 : i32
    %c5_i32_66 = arith.constant 5 : i32
    %134 = arith.muli %c3_i32_65, %c5_i32_66 : i32
    %135 = arith.addi %1, %134 : i32
    %136 = arith.index_cast %135 : i32 to index
    %137 = memref.load %arg1[%136] : memref<40xi32, #tpu.memory_space<smem>>
    %138 = arith.index_cast %137 : i32 to index
    %c0_67 = arith.constant 0 : index
    %139 = vector.load %arg2[%138, %c0_67] : memref<60x32xf32, #tpu.memory_space<vmem>>, vector<1x32xf32>
    %140 = arith.index_cast %c3_i32_65 : i32 to index
    %c0_68 = arith.constant 0 : index
    %141 = vector.load %arg5[%140, %c0_68] : memref<8x32xf32, #tpu.memory_space<vmem>>, vector<1x32xf32>
    tpu.vector_store %arg5[%140, %c0_68], %139 {strides = array<i32>} : memref<8x32xf32, #tpu.memory_space<vmem>>, vector<1x32xf32>,
    %c1_i32_69 = arith.constant 1 : i32
    %142 = arith.addi %135, %c1_i32_69 : i32
    %c0_i32_70 = arith.constant 0 : i32
    %143 = arith.addi %142, %c0_i32_70 : i32
    %144 = arith.index_cast %143 : i32 to index
    %145 = memref.load %arg1[%144] : memref<40xi32, #tpu.memory_space<smem>>
    %146 = arith.index_cast %145 : i32 to index
    %c0_71 = arith.constant 0 : index
    %147 = vector.load %arg3[%146, %c0_71] : memref<60x32xf32, #tpu.memory_space<vmem>>, vector<1x32xf32>
    %c0_i32_72 = arith.constant 0 : i32
    %148 = arith.addi %c0_i32_72, %c3_i32_65 : i32
    %149 = arith.index_cast %148 : i32 to index
    %c0_73 = arith.constant 0 : index
    %150 = vector.load %arg6[%149, %c0_73] : memref<32x32xf32, #tpu.memory_space<vmem>>, vector<1x32xf32>
    tpu.vector_store %arg6[%149, %c0_73], %147 {strides = array<i32>} : memref<32x32xf32, #tpu.memory_space<vmem>>, vector<1x32xf32>,
    %c1_i32_74 = arith.constant 1 : i32
    %151 = arith.addi %135, %c1_i32_74 : i32
    %c1_i32_75 = arith.constant 1 : i32
    %152 = arith.addi %151, %c1_i32_75 : i32
    %153 = arith.index_cast %152 : i32 to index
    %154 = memref.load %arg1[%153] : memref<40xi32, #tpu.memory_space<smem>>
    %155 = arith.index_cast %154 : i32 to index
    %c0_76 = arith.constant 0 : index
    %156 = vector.load %arg3[%155, %c0_76] : memref<60x32xf32, #tpu.memory_space<vmem>>, vector<1x32xf32>
    %c8_i32_77 = arith.constant 8 : i32
    %157 = arith.addi %c8_i32_77, %c3_i32_65 : i32
    %158 = arith.index_cast %157 : i32 to index
    %c0_78 = arith.constant 0 : index
    %159 = vector.load %arg6[%158, %c0_78] : memref<32x32xf32, #tpu.memory_space<vmem>>, vector<1x32xf32>
    tpu.vector_store %arg6[%158, %c0_78], %156 {strides = array<i32>} : memref<32x32xf32, #tpu.memory_space<vmem>>, vector<1x32xf32>,
    %c1_i32_79 = arith.constant 1 : i32
    %160 = arith.addi %135, %c1_i32_79 : i32
    %c2_i32_80 = arith.constant 2 : i32
    %161 = arith.addi %160, %c2_i32_80 : i32
    %162 = arith.index_cast %161 : i32 to index
    %163 = memref.load %arg1[%162] : memref<40xi32, #tpu.memory_space<smem>>
    %164 = arith.index_cast %163 : i32 to index
    %c0_81 = arith.constant 0 : index
    %165 = vector.load %arg3[%164, %c0_81] : memref<60x32xf32, #tpu.memory_space<vmem>>, vector<1x32xf32>
    %c16_i32_82 = arith.constant 16 : i32
    %166 = arith.addi %c16_i32_82, %c3_i32_65 : i32
    %167 = arith.index_cast %166 : i32 to index
    %c0_83 = arith.constant 0 : index
    %168 = vector.load %arg6[%167, %c0_83] : memref<32x32xf32, #tpu.memory_space<vmem>>, vector<1x32xf32>
    tpu.vector_store %arg6[%167, %c0_83], %165 {strides = array<i32>} : memref<32x32xf32, #tpu.memory_space<vmem>>, vector<1x32xf32>,
    %c1_i32_84 = arith.constant 1 : i32
    %169 = arith.addi %135, %c1_i32_84 : i32
    %c3_i32_85 = arith.constant 3 : i32
    %170 = arith.addi %169, %c3_i32_85 : i32
    %171 = arith.index_cast %170 : i32 to index
    %172 = memref.load %arg1[%171] : memref<40xi32, #tpu.memory_space<smem>>
    %173 = arith.index_cast %172 : i32 to index
    %c0_86 = arith.constant 0 : index
    %174 = vector.load %arg3[%173, %c0_86] : memref<60x32xf32, #tpu.memory_space<vmem>>, vector<1x32xf32>
    %c24_i32_87 = arith.constant 24 : i32
    %175 = arith.addi %c24_i32_87, %c3_i32_65 : i32
    %176 = arith.index_cast %175 : i32 to index
    %c0_88 = arith.constant 0 : index
    %177 = vector.load %arg6[%176, %c0_88] : memref<32x32xf32, #tpu.memory_space<vmem>>, vector<1x32xf32>
    tpu.vector_store %arg6[%176, %c0_88], %174 {strides = array<i32>} : memref<32x32xf32, #tpu.memory_space<vmem>>, vector<1x32xf32>,
    %c4_i32 = arith.constant 4 : i32
    %c5_i32_89 = arith.constant 5 : i32
    %178 = arith.muli %c4_i32, %c5_i32_89 : i32
    %179 = arith.addi %1, %178 : i32
    %180 = arith.index_cast %179 : i32 to index
    %181 = memref.load %arg1[%180] : memref<40xi32, #tpu.memory_space<smem>>
    %182 = arith.index_cast %181 : i32 to index
    %c0_90 = arith.constant 0 : index
    %183 = vector.load %arg2[%182, %c0_90] : memref<60x32xf32, #tpu.memory_space<vmem>>, vector<1x32xf32>
    %184 = arith.index_cast %c4_i32 : i32 to index
    %c0_91 = arith.constant 0 : index
    %185 = vector.load %arg5[%184, %c0_91] : memref<8x32xf32, #tpu.memory_space<vmem>>, vector<1x32xf32>
    tpu.vector_store %arg5[%184, %c0_91], %183 {strides = array<i32>} : memref<8x32xf32, #tpu.memory_space<vmem>>, vector<1x32xf32>,
    %c1_i32_92 = arith.constant 1 : i32
    %186 = arith.addi %179, %c1_i32_92 : i32
    %c0_i32_93 = arith.constant 0 : i32
    %187 = arith.addi %186, %c0_i32_93 : i32
    %188 = arith.index_cast %187 : i32 to index
    %189 = memref.load %arg1[%188] : memref<40xi32, #tpu.memory_space<smem>>
    %190 = arith.index_cast %189 : i32 to index
    %c0_94 = arith.constant 0 : index
    %191 = vector.load %arg3[%190, %c0_94] : memref<60x32xf32, #tpu.memory_space<vmem>>, vector<1x32xf32>
    %c0_i32_95 = arith.constant 0 : i32
    %192 = arith.addi %c0_i32_95, %c4_i32 : i32
    %193 = arith.index_cast %192 : i32 to index
    %c0_96 = arith.constant 0 : index
    %194 = vector.load %arg6[%193, %c0_96] : memref<32x32xf32, #tpu.memory_space<vmem>>, vector<1x32xf32>
    tpu.vector_store %arg6[%193, %c0_96], %191 {strides = array<i32>} : memref<32x32xf32, #tpu.memory_space<vmem>>, vector<1x32xf32>,
    %c1_i32_97 = arith.constant 1 : i32
    %195 = arith.addi %179, %c1_i32_97 : i32
    %c1_i32_98 = arith.constant 1 : i32
    %196 = arith.addi %195, %c1_i32_98 : i32
    %197 = arith.index_cast %196 : i32 to index
    %198 = memref.load %arg1[%197] : memref<40xi32, #tpu.memory_space<smem>>
    %199 = arith.index_cast %198 : i32 to index
    %c0_99 = arith.constant 0 : index
    %200 = vector.load %arg3[%199, %c0_99] : memref<60x32xf32, #tpu.memory_space<vmem>>, vector<1x32xf32>
    %c8_i32_100 = arith.constant 8 : i32
    %201 = arith.addi %c8_i32_100, %c4_i32 : i32
    %202 = arith.index_cast %201 : i32 to index
    %c0_101 = arith.constant 0 : index
    %203 = vector.load %arg6[%202, %c0_101] : memref<32x32xf32, #tpu.memory_space<vmem>>, vector<1x32xf32>
    tpu.vector_store %arg6[%202, %c0_101], %200 {strides = array<i32>} : memref<32x32xf32, #tpu.memory_space<vmem>>, vector<1x32xf32>,
    %c1_i32_102 = arith.constant 1 : i32
    %204 = arith.addi %179, %c1_i32_102 : i32
    %c2_i32_103 = arith.constant 2 : i32
    %205 = arith.addi %204, %c2_i32_103 : i32
    %206 = arith.index_cast %205 : i32 to index
    %207 = memref.load %arg1[%206] : memref<40xi32, #tpu.memory_space<smem>>
    %208 = arith.index_cast %207 : i32 to index
    %c0_104 = arith.constant 0 : index
    %209 = vector.load %arg3[%208, %c0_104] : memref<60x32xf32, #tpu.memory_space<vmem>>, vector<1x32xf32>
    %c16_i32_105 = arith.constant 16 : i32
    %210 = arith.addi %c16_i32_105, %c4_i32 : i32
    %211 = arith.index_cast %210 : i32 to index
    %c0_106 = arith.constant 0 : index
    %212 = vector.load %arg6[%211, %c0_106] : memref<32x32xf32, #tpu.memory_space<vmem>>, vector<1x32xf32>
    tpu.vector_store %arg6[%211, %c0_106], %209 {strides = array<i32>} : memref<32x32xf32, #tpu.memory_space<vmem>>, vector<1x32xf32>,
    %c1_i32_107 = arith.constant 1 : i32
    %213 = arith.addi %179, %c1_i32_107 : i32
    %c3_i32_108 = arith.constant 3 : i32
    %214 = arith.addi %213, %c3_i32_108 : i32
    %215 = arith.index_cast %214 : i32 to index
    %216 = memref.load %arg1[%215] : memref<40xi32, #tpu.memory_space<smem>>
    %217 = arith.index_cast %216 : i32 to index
    %c0_109 = arith.constant 0 : index
    %218 = vector.load %arg3[%217, %c0_109] : memref<60x32xf32, #tpu.memory_space<vmem>>, vector<1x32xf32>
    %c24_i32_110 = arith.constant 24 : i32
    %219 = arith.addi %c24_i32_110, %c4_i32 : i32
    %220 = arith.index_cast %219 : i32 to index
    %c0_111 = arith.constant 0 : index
    %221 = vector.load %arg6[%220, %c0_111] : memref<32x32xf32, #tpu.memory_space<vmem>>, vector<1x32xf32>
    tpu.vector_store %arg6[%220, %c0_111], %218 {strides = array<i32>} : memref<32x32xf32, #tpu.memory_space<vmem>>, vector<1x32xf32>,
    %c5_i32_112 = arith.constant 5 : i32
    %c5_i32_113 = arith.constant 5 : i32
    %222 = arith.muli %c5_i32_112, %c5_i32_113 : i32
    %223 = arith.addi %1, %222 : i32
    %224 = arith.index_cast %223 : i32 to index
    %225 = memref.load %arg1[%224] : memref<40xi32, #tpu.memory_space<smem>>
    %226 = arith.index_cast %225 : i32 to index
    %c0_114 = arith.constant 0 : index
    %227 = vector.load %arg2[%226, %c0_114] : memref<60x32xf32, #tpu.memory_space<vmem>>, vector<1x32xf32>
    %228 = arith.index_cast %c5_i32_112 : i32 to index
    %c0_115 = arith.constant 0 : index
    %229 = vector.load %arg5[%228, %c0_115] : memref<8x32xf32, #tpu.memory_space<vmem>>, vector<1x32xf32>
    tpu.vector_store %arg5[%228, %c0_115], %227 {strides = array<i32>} : memref<8x32xf32, #tpu.memory_space<vmem>>, vector<1x32xf32>,
    %c1_i32_116 = arith.constant 1 : i32
    %230 = arith.addi %223, %c1_i32_116 : i32
    %c0_i32_117 = arith.constant 0 : i32
    %231 = arith.addi %230, %c0_i32_117 : i32
    %232 = arith.index_cast %231 : i32 to index
    %233 = memref.load %arg1[%232] : memref<40xi32, #tpu.memory_space<smem>>
    %234 = arith.index_cast %233 : i32 to index
    %c0_118 = arith.constant 0 : index
    %235 = vector.load %arg3[%234, %c0_118] : memref<60x32xf32, #tpu.memory_space<vmem>>, vector<1x32xf32>
    %c0_i32_119 = arith.constant 0 : i32
    %236 = arith.addi %c0_i32_119, %c5_i32_112 : i32
    %237 = arith.index_cast %236 : i32 to index
    %c0_120 = arith.constant 0 : index
    %238 = vector.load %arg6[%237, %c0_120] : memref<32x32xf32, #tpu.memory_space<vmem>>, vector<1x32xf32>
    tpu.vector_store %arg6[%237, %c0_120], %235 {strides = array<i32>} : memref<32x32xf32, #tpu.memory_space<vmem>>, vector<1x32xf32>,
    %c1_i32_121 = arith.constant 1 : i32
    %239 = arith.addi %223, %c1_i32_121 : i32
    %c1_i32_122 = arith.constant 1 : i32
    %240 = arith.addi %239, %c1_i32_122 : i32
    %241 = arith.index_cast %240 : i32 to index
    %242 = memref.load %arg1[%241] : memref<40xi32, #tpu.memory_space<smem>>
    %243 = arith.index_cast %242 : i32 to index
    %c0_123 = arith.constant 0 : index
    %244 = vector.load %arg3[%243, %c0_123] : memref<60x32xf32, #tpu.memory_space<vmem>>, vector<1x32xf32>
    %c8_i32_124 = arith.constant 8 : i32
    %245 = arith.addi %c8_i32_124, %c5_i32_112 : i32
    %246 = arith.index_cast %245 : i32 to index
    %c0_125 = arith.constant 0 : index
    %247 = vector.load %arg6[%246, %c0_125] : memref<32x32xf32, #tpu.memory_space<vmem>>, vector<1x32xf32>
    tpu.vector_store %arg6[%246, %c0_125], %244 {strides = array<i32>} : memref<32x32xf32, #tpu.memory_space<vmem>>, vector<1x32xf32>,
    %c1_i32_126 = arith.constant 1 : i32
    %248 = arith.addi %223, %c1_i32_126 : i32
    %c2_i32_127 = arith.constant 2 : i32
    %249 = arith.addi %248, %c2_i32_127 : i32
    %250 = arith.index_cast %249 : i32 to index
    %251 = memref.load %arg1[%250] : memref<40xi32, #tpu.memory_space<smem>>
    %252 = arith.index_cast %251 : i32 to index
    %c0_128 = arith.constant 0 : index
    %253 = vector.load %arg3[%252, %c0_128] : memref<60x32xf32, #tpu.memory_space<vmem>>, vector<1x32xf32>
    %c16_i32_129 = arith.constant 16 : i32
    %254 = arith.addi %c16_i32_129, %c5_i32_112 : i32
    %255 = arith.index_cast %254 : i32 to index
    %c0_130 = arith.constant 0 : index
    %256 = vector.load %arg6[%255, %c0_130] : memref<32x32xf32, #tpu.memory_space<vmem>>, vector<1x32xf32>
    tpu.vector_store %arg6[%255, %c0_130], %253 {strides = array<i32>} : memref<32x32xf32, #tpu.memory_space<vmem>>, vector<1x32xf32>,
    %c1_i32_131 = arith.constant 1 : i32
    %257 = arith.addi %223, %c1_i32_131 : i32
    %c3_i32_132 = arith.constant 3 : i32
    %258 = arith.addi %257, %c3_i32_132 : i32
    %259 = arith.index_cast %258 : i32 to index
    %260 = memref.load %arg1[%259] : memref<40xi32, #tpu.memory_space<smem>>
    %261 = arith.index_cast %260 : i32 to index
    %c0_133 = arith.constant 0 : index
    %262 = vector.load %arg3[%261, %c0_133] : memref<60x32xf32, #tpu.memory_space<vmem>>, vector<1x32xf32>
    %c24_i32_134 = arith.constant 24 : i32
    %263 = arith.addi %c24_i32_134, %c5_i32_112 : i32
    %264 = arith.index_cast %263 : i32 to index
    %c0_135 = arith.constant 0 : index
    %265 = vector.load %arg6[%264, %c0_135] : memref<32x32xf32, #tpu.memory_space<vmem>>, vector<1x32xf32>
    tpu.vector_store %arg6[%264, %c0_135], %262 {strides = array<i32>} : memref<32x32xf32, #tpu.memory_space<vmem>>, vector<1x32xf32>,
    %c6_i32 = arith.constant 6 : i32
    %c5_i32_136 = arith.constant 5 : i32
    %266 = arith.muli %c6_i32, %c5_i32_136 : i32
    %267 = arith.addi %1, %266 : i32
    %268 = arith.index_cast %267 : i32 to index
    %269 = memref.load %arg1[%268] : memref<40xi32, #tpu.memory_space<smem>>
    %270 = arith.index_cast %269 : i32 to index
    %c0_137 = arith.constant 0 : index
    %271 = vector.load %arg2[%270, %c0_137] : memref<60x32xf32, #tpu.memory_space<vmem>>, vector<1x32xf32>
    %272 = arith.index_cast %c6_i32 : i32 to index
    %c0_138 = arith.constant 0 : index
    %273 = vector.load %arg5[%272, %c0_138] : memref<8x32xf32, #tpu.memory_space<vmem>>, vector<1x32xf32>
    tpu.vector_store %arg5[%272, %c0_138], %271 {strides = array<i32>} : memref<8x32xf32, #tpu.memory_space<vmem>>, vector<1x32xf32>,
    %c1_i32_139 = arith.constant 1 : i32
    %274 = arith.addi %267, %c1_i32_139 : i32
    %c0_i32_140 = arith.constant 0 : i32
    %275 = arith.addi %274, %c0_i32_140 : i32
    %276 = arith.index_cast %275 : i32 to index
    %277 = memref.load %arg1[%276] : memref<40xi32, #tpu.memory_space<smem>>
    %278 = arith.index_cast %277 : i32 to index
    %c0_141 = arith.constant 0 : index
    %279 = vector.load %arg3[%278, %c0_141] : memref<60x32xf32, #tpu.memory_space<vmem>>, vector<1x32xf32>
    %c0_i32_142 = arith.constant 0 : i32
    %280 = arith.addi %c0_i32_142, %c6_i32 : i32
    %281 = arith.index_cast %280 : i32 to index
    %c0_143 = arith.constant 0 : index
    %282 = vector.load %arg6[%281, %c0_143] : memref<32x32xf32, #tpu.memory_space<vmem>>, vector<1x32xf32>
    tpu.vector_store %arg6[%281, %c0_143], %279 {strides = array<i32>} : memref<32x32xf32, #tpu.memory_space<vmem>>, vector<1x32xf32>,
    %c1_i32_144 = arith.constant 1 : i32
    %283 = arith.addi %267, %c1_i32_144 : i32
    %c1_i32_145 = arith.constant 1 : i32
    %284 = arith.addi %283, %c1_i32_145 : i32
    %285 = arith.index_cast %284 : i32 to index
    %286 = memref.load %arg1[%285] : memref<40xi32, #tpu.memory_space<smem>>
    %287 = arith.index_cast %286 : i32 to index
    %c0_146 = arith.constant 0 : index
    %288 = vector.load %arg3[%287, %c0_146] : memref<60x32xf32, #tpu.memory_space<vmem>>, vector<1x32xf32>
    %c8_i32_147 = arith.constant 8 : i32
    %289 = arith.addi %c8_i32_147, %c6_i32 : i32
    %290 = arith.index_cast %289 : i32 to index
    %c0_148 = arith.constant 0 : index
    %291 = vector.load %arg6[%290, %c0_148] : memref<32x32xf32, #tpu.memory_space<vmem>>, vector<1x32xf32>
    tpu.vector_store %arg6[%290, %c0_148], %288 {strides = array<i32>} : memref<32x32xf32, #tpu.memory_space<vmem>>, vector<1x32xf32>,
    %c1_i32_149 = arith.constant 1 : i32
    %292 = arith.addi %267, %c1_i32_149 : i32
    %c2_i32_150 = arith.constant 2 : i32
    %293 = arith.addi %292, %c2_i32_150 : i32
    %294 = arith.index_cast %293 : i32 to index
    %295 = memref.load %arg1[%294] : memref<40xi32, #tpu.memory_space<smem>>
    %296 = arith.index_cast %295 : i32 to index
    %c0_151 = arith.constant 0 : index
    %297 = vector.load %arg3[%296, %c0_151] : memref<60x32xf32, #tpu.memory_space<vmem>>, vector<1x32xf32>
    %c16_i32_152 = arith.constant 16 : i32
    %298 = arith.addi %c16_i32_152, %c6_i32 : i32
    %299 = arith.index_cast %298 : i32 to index
    %c0_153 = arith.constant 0 : index
    %300 = vector.load %arg6[%299, %c0_153] : memref<32x32xf32, #tpu.memory_space<vmem>>, vector<1x32xf32>
    tpu.vector_store %arg6[%299, %c0_153], %297 {strides = array<i32>} : memref<32x32xf32, #tpu.memory_space<vmem>>, vector<1x32xf32>,
    %c1_i32_154 = arith.constant 1 : i32
    %301 = arith.addi %267, %c1_i32_154 : i32
    %c3_i32_155 = arith.constant 3 : i32
    %302 = arith.addi %301, %c3_i32_155 : i32
    %303 = arith.index_cast %302 : i32 to index
    %304 = memref.load %arg1[%303] : memref<40xi32, #tpu.memory_space<smem>>
    %305 = arith.index_cast %304 : i32 to index
    %c0_156 = arith.constant 0 : index
    %306 = vector.load %arg3[%305, %c0_156] : memref<60x32xf32, #tpu.memory_space<vmem>>, vector<1x32xf32>
    %c24_i32_157 = arith.constant 24 : i32
    %307 = arith.addi %c24_i32_157, %c6_i32 : i32
    %308 = arith.index_cast %307 : i32 to index
    %c0_158 = arith.constant 0 : index
    %309 = vector.load %arg6[%308, %c0_158] : memref<32x32xf32, #tpu.memory_space<vmem>>, vector<1x32xf32>
    tpu.vector_store %arg6[%308, %c0_158], %306 {strides = array<i32>} : memref<32x32xf32, #tpu.memory_space<vmem>>, vector<1x32xf32>,
    %c7_i32 = arith.constant 7 : i32
    %c5_i32_159 = arith.constant 5 : i32
    %310 = arith.muli %c7_i32, %c5_i32_159 : i32
    %311 = arith.addi %1, %310 : i32
    %312 = arith.index_cast %311 : i32 to index
    %313 = memref.load %arg1[%312] : memref<40xi32, #tpu.memory_space<smem>>
    %314 = arith.index_cast %313 : i32 to index
    %c0_160 = arith.constant 0 : index
    %315 = vector.load %arg2[%314, %c0_160] : memref<60x32xf32, #tpu.memory_space<vmem>>, vector<1x32xf32>
    %316 = arith.index_cast %c7_i32 : i32 to index
    %c0_161 = arith.constant 0 : index
    %317 = vector.load %arg5[%316, %c0_161] : memref<8x32xf32, #tpu.memory_space<vmem>>, vector<1x32xf32>
    tpu.vector_store %arg5[%316, %c0_161], %315 {strides = array<i32>} : memref<8x32xf32, #tpu.memory_space<vmem>>, vector<1x32xf32>,
    %c1_i32_162 = arith.constant 1 : i32
    %318 = arith.addi %311, %c1_i32_162 : i32
    %c0_i32_163 = arith.constant 0 : i32
    %319 = arith.addi %318, %c0_i32_163 : i32
    %320 = arith.index_cast %319 : i32 to index
    %321 = memref.load %arg1[%320] : memref<40xi32, #tpu.memory_space<smem>>
    %322 = arith.index_cast %321 : i32 to index
    %c0_164 = arith.constant 0 : index
    %323 = vector.load %arg3[%322, %c0_164] : memref<60x32xf32, #tpu.memory_space<vmem>>, vector<1x32xf32>
    %c0_i32_165 = arith.constant 0 : i32
    %324 = arith.addi %c0_i32_165, %c7_i32 : i32
    %325 = arith.index_cast %324 : i32 to index
    %c0_166 = arith.constant 0 : index
    %326 = vector.load %arg6[%325, %c0_166] : memref<32x32xf32, #tpu.memory_space<vmem>>, vector<1x32xf32>
    tpu.vector_store %arg6[%325, %c0_166], %323 {strides = array<i32>} : memref<32x32xf32, #tpu.memory_space<vmem>>, vector<1x32xf32>,
    %c1_i32_167 = arith.constant 1 : i32
    %327 = arith.addi %311, %c1_i32_167 : i32
    %c1_i32_168 = arith.constant 1 : i32
    %328 = arith.addi %327, %c1_i32_168 : i32
    %329 = arith.index_cast %328 : i32 to index
    %330 = memref.load %arg1[%329] : memref<40xi32, #tpu.memory_space<smem>>
    %331 = arith.index_cast %330 : i32 to index
    %c0_169 = arith.constant 0 : index
    %332 = vector.load %arg3[%331, %c0_169] : memref<60x32xf32, #tpu.memory_space<vmem>>, vector<1x32xf32>
    %c8_i32_170 = arith.constant 8 : i32
    %333 = arith.addi %c8_i32_170, %c7_i32 : i32
    %334 = arith.index_cast %333 : i32 to index
    %c0_171 = arith.constant 0 : index
    %335 = vector.load %arg6[%334, %c0_171] : memref<32x32xf32, #tpu.memory_space<vmem>>, vector<1x32xf32>
    tpu.vector_store %arg6[%334, %c0_171], %332 {strides = array<i32>} : memref<32x32xf32, #tpu.memory_space<vmem>>, vector<1x32xf32>,
    %c1_i32_172 = arith.constant 1 : i32
    %336 = arith.addi %311, %c1_i32_172 : i32
    %c2_i32_173 = arith.constant 2 : i32
    %337 = arith.addi %336, %c2_i32_173 : i32
    %338 = arith.index_cast %337 : i32 to index
    %339 = memref.load %arg1[%338] : memref<40xi32, #tpu.memory_space<smem>>
    %340 = arith.index_cast %339 : i32 to index
    %c0_174 = arith.constant 0 : index
    %341 = vector.load %arg3[%340, %c0_174] : memref<60x32xf32, #tpu.memory_space<vmem>>, vector<1x32xf32>
    %c16_i32_175 = arith.constant 16 : i32
    %342 = arith.addi %c16_i32_175, %c7_i32 : i32
    %343 = arith.index_cast %342 : i32 to index
    %c0_176 = arith.constant 0 : index
    %344 = vector.load %arg6[%343, %c0_176] : memref<32x32xf32, #tpu.memory_space<vmem>>, vector<1x32xf32>
    tpu.vector_store %arg6[%343, %c0_176], %341 {strides = array<i32>} : memref<32x32xf32, #tpu.memory_space<vmem>>, vector<1x32xf32>,
    %c1_i32_177 = arith.constant 1 : i32
    %345 = arith.addi %311, %c1_i32_177 : i32
    %c3_i32_178 = arith.constant 3 : i32
    %346 = arith.addi %345, %c3_i32_178 : i32
    %347 = arith.index_cast %346 : i32 to index
    %348 = memref.load %arg1[%347] : memref<40xi32, #tpu.memory_space<smem>>
    %349 = arith.index_cast %348 : i32 to index
    %c0_179 = arith.constant 0 : index
    %350 = vector.load %arg3[%349, %c0_179] : memref<60x32xf32, #tpu.memory_space<vmem>>, vector<1x32xf32>
    %c24_i32_180 = arith.constant 24 : i32
    %351 = arith.addi %c24_i32_180, %c7_i32 : i32
    %352 = arith.index_cast %351 : i32 to index
    %c0_181 = arith.constant 0 : index
    %353 = vector.load %arg6[%352, %c0_181] : memref<32x32xf32, #tpu.memory_space<vmem>>, vector<1x32xf32>
    tpu.vector_store %arg6[%352, %c0_181], %350 {strides = array<i32>} : memref<32x32xf32, #tpu.memory_space<vmem>>, vector<1x32xf32>,
    %c8_i32_182 = arith.constant 8 : i32
    %c0_183 = arith.constant 0 : index
    %c0_184 = arith.constant 0 : index
    %354 = vector.load %arg5[%c0_183, %c0_184] : memref<8x32xf32, #tpu.memory_space<vmem>>, vector<8x32xf32>
    %c0_185 = arith.constant 0 : index
    %c0_186 = arith.constant 0 : index
    %355 = vector.load %arg6[%c0_185, %c0_186] : memref<32x32xf32, #tpu.memory_space<vmem>>, vector<32x32xf32>
    %356 = vector.shape_cast %355 : vector<32x32xf32> to vector<4x8x32xf32>
    %357 = vector.shape_cast %354 : vector<8x32xf32> to vector<1x8x32xf32>
    %358 = vector.broadcast %357 : vector<1x8x32xf32> to vector<4x8x32xf32>
    %359 = arith.mulf %356, %358 : vector<4x8x32xf32>
    %cst = arith.constant dense<0.000000e+00> : vector<4x8xf32>
    %360 = vector.multi_reduction <add>, %359, %cst [2] : vector<4x8x32xf32> to vector<4x8xf32>
    %cst_187 = arith.constant 0.000000e+00 : f32
    %361 = vector.broadcast %cst_187 : f32 to vector<4x8xf32>
    %362 = arith.subf %361, %360 : vector<4x8xf32>
    %cst_188 = arith.constant 0.000000e+00 : f32
    %363 = vector.broadcast %cst_188 : f32 to vector<4x8xf32>
    %364 = arith.minimumf %362, %363 : vector<4x8xf32>
    %365 = math.absf %362 : vector<4x8xf32>
    %cst_189 = arith.constant 0.000000e+00 : f32
    %366 = vector.broadcast %cst_189 : f32 to vector<4x8xf32>
    %367 = arith.subf %366, %365 : vector<4x8xf32>
    %368 = math.exp %367 : vector<4x8xf32>
    %369 = math.log1p %368 : vector<4x8xf32>
    %370 = arith.subf %364, %369 : vector<4x8xf32>
    %c0_190 = arith.constant 0 : index
    %c0_191 = arith.constant 0 : index
    %371 = vector.load %arg4[%c0_190, %c0_191] : memref<4x8xf32, #tpu.memory_space<vmem>>, vector<4x8xf32>
    tpu.vector_store %arg4[%c0_190, %c0_191], %370 {strides = array<i32>} : memref<4x8xf32, #tpu.memory_space<vmem>>, vector<4x8xf32>,
    return
  }
  func.func @transform_0(%arg0: i32, %arg1: memref<40xi32, #tpu.memory_space<smem>>) -> (i32, i32) {
    %c0_i32 = arith.constant 0 : i32
    %c0_i32_0 = arith.constant 0 : i32
    %c0_i32_1 = arith.constant 0 : i32
    return %c0_i32, %c0_i32_0 : i32, i32
  }
  func.func @transform_1(%arg0: i32, %arg1: memref<40xi32, #tpu.memory_space<smem>>) -> (i32, i32) {
    %c0_i32 = arith.constant 0 : i32
    %c0_i32_0 = arith.constant 0 : i32
    %c0_i32_1 = arith.constant 0 : i32
    return %c0_i32, %c0_i32_0 : i32, i32
  }
  func.func @transform_2(%arg0: i32, %arg1: memref<40xi32, #tpu.memory_space<smem>>) -> (i32, i32) {
    %c0_i32 = arith.constant 0 : i32
    %c0_i32_0 = arith.constant 0 : i32
    return %c0_i32, %arg0 : i32, i32
  }
}

</mosaic_0001>

<llo_original>
// kernel: tpu_custom_call.1
$region0: #{tpu_custom_call.1}
  #allocation0 [shape = 'u32[]', space=smem, size = 0x4, offset = 0x4, fixed_abs, tag = 'smem constant byte address 0x4 - core index']
  #allocation1 [shape = 'u32[144,128]{1,0:T(1,128)}', space=vmem, size = 0x12000, scoped, tag = 'internal scratch']
  #allocation2 [shape = 'f32[8,32]{1,0:T(8,128)}', space=vmem, size = 0x1000, scoped, tag = 'scratch operand']
  #allocation3 [shape = 'f32[32,32]{1,0:T(8,128)}', space=vmem, size = 0x4000, scoped, tag = 'scratch operand']
  #allocation4 [shape = 's32[1]{0}', space=sflag, size = 0x4, scoped, tag = 'scoped memory for tpu_custom_call.1']
  #allocation5 [shape = 'u8[512]{0}', space=smem, size = 0x200, scoped, tag = 'prefetched SMEM operand 0']
  %s0 = inlined_call_operand.vmem [shape: s32[40], index: 0, kind: input, shape index: {}]
  %s1 = inlined_call_operand.vmem [shape: f32[60,32], index: 1, kind: input, shape index: {}]
  %s2 = inlined_call_operand.vmem [shape: f32[60,32], index: 2, kind: input, shape index: {}]
  %s3 = inlined_call_operand.hbm [shape: f32[4,8], index: 3, kind: output, shape index: {}]
  %s4 = sld [smem:[#allocation0]]
  $region18: #{tpu_custom_call.1} parent=0
    _
  %s6 = ssub.s32 1, %s4
  %s7 = scalar_select 0, %s6, %s4
  %s8 = sshll.u32 %s0, 4
  %s9 = int_to_ptr.vmem [resolvable:$true] %s8
  %11 = dma.vmem_to_smem %s9, 16, [#allocation5], [#allocation4]
  %12 = dma.done [#allocation4], 16
  %13 = sfence
  $region1: #{tpu_custom_call.1} parent=0
    #allocation6 [shape = 'u8[2048]{0}', space=vmem, size = 0x800, scoped, tag = 'output window, operand 0, single buffered']
    #allocation7 [shape = 's32[1]{0}', space=sflag, size = 0x4, scoped, tag = 'scoped memory for tpu_custom_call.1']
    %14 = vsyncpa [#allocation7], 0
    // Predicated region
    $region2: #{tpu_custom_call.1} parent=1 // pred_check
      _
    $region3: #{tpu_custom_call.1} parent=1 // pred_check_branch
      %16 = sbr.rel (0) target = $region5
    $region4: #{tpu_custom_call.1} parent=1 // pred_region
      _
    $region5: #{tpu_custom_call.1} parent=1 // pred_fallthru
      _
    // Predicated region
    $region6: #{tpu_custom_call.1} parent=1 // pred_check
      _
    $region7: #{tpu_custom_call.1} parent=1 // pred_check_branch
      %18 = sbr.rel (0) target = $region9
    $region8: #{tpu_custom_call.1} parent=1 // pred_region
      _
    $region9: #{tpu_custom_call.1} parent=1 // pred_fallthru
      _
    %s19 = smul.u32 0, 40
    %s20 = sld [smem:[#allocation5 + %s19]]
    %s21 = scalar_lea.vmem %s1, %s20
    %v22 = vld [vmem:[%s21] sm:$0x1]
    %vm23 = vcmask 253952
    %24 = vst.msk [vmem:[#allocation2] sm:$0x1] %vm23, %v22
    %s25 = sadd.s32 %s19, 1
    %s26 = sld [smem:[#allocation5 + %s25]]
    %s27 = scalar_lea.vmem %s2, %s26
    %v28 = vld [vmem:[%s27] sm:$0x1]
    %29 = vst.msk [vmem:[#allocation3] sm:$0x1] %vm23, %v28
    %s30 = sadd.s32 %s19, 2
    %s31 = sld [smem:[#allocation5 + %s30]]
    %s32 = scalar_lea.vmem %s2, %s31
    %v33 = vld [vmem:[%s32] sm:$0x1]
    %34 = vst.msk [vmem:[#allocation3 + $0x8] sm:$0x1] %vm23, %v33
    %s35 = sadd.s32 %s19, 3
    %s36 = sld [smem:[#allocation5 + %s35]]
    %s37 = scalar_lea.vmem %s2, %s36
    %v38 = vld [vmem:[%s37] sm:$0x1]
    %39 = vst.msk [vmem:[#allocation3 + $0x10] sm:$0x1] %vm23, %v38
    %s40 = sadd.s32 %s19, 4
    %s41 = sld [smem:[#allocation5 + %s40]]
    %s42 = scalar_lea.vmem %s2, %s41
    %v43 = vld [vmem:[%s42] sm:$0x1]
    %44 = vst.msk [vmem:[#allocation3 + $0x18] sm:$0x1] %vm23, %v43
    %s45 = sadd.s32 %s19, 5
    %s46 = sld [smem:[#allocation5 + %s45]]
    %s47 = scalar_lea.vmem %s1, %s46
    %v48 = vld [vmem:[%s47] sm:$0x1]
    %49 = vst.msk [vmem:[#allocation2 + $0x1] sm:$0x1] %vm23, %v48
    %s50 = sadd.s32 %s19, 6
    %s51 = sld [smem:[#allocation5 + %s50]]
    %s52 = scalar_lea.vmem %s2, %s51
    %v53 = vld [vmem:[%s52] sm:$0x1]
    %54 = vst.msk [vmem:[#allocation3 + $0x1] sm:$0x1] %vm23, %v53
    %s55 = sadd.s32 %s19, 7
    %s56 = sld [smem:[#allocation5 + %s55]]
    %s57 = scalar_lea.vmem %s2, %s56
    %v58 = vld [vmem:[%s57] sm:$0x1]
    %59 = vst.msk [vmem:[#allocation3 + $0x9] sm:$0x1] %vm23, %v58
    %s60 = sadd.s32 %s19, 8
    %s61 = sld [smem:[#allocation5 + %s60]]
    %s62 = scalar_lea.vmem %s2, %s61
    %v63 = vld [vmem:[%s62] sm:$0x1]
    %64 = vst.msk [vmem:[#allocation3 + $0x11] sm:$0x1] %vm23, %v63
    %s65 = sadd.s32 %s19, 9
    %s66 = sld [smem:[#allocation5 + %s65]]
    %s67 = scalar_lea.vmem %s2, %s66
    %v68 = vld [vmem:[%s67] sm:$0x1]
    %69 = vst.msk [vmem:[#allocation3 + $0x19] sm:$0x1] %vm23, %v68
    %s70 = sadd.s32 %s19, 10
    %s71 = sld [smem:[#allocation5 + %s70]]
    %s72 = scalar_lea.vmem %s1, %s71
    %v73 = vld [vmem:[%s72] sm:$0x1]
    %74 = vst.msk [vmem:[#allocation2 + $0x2] sm:$0x1] %vm23, %v73
    %s75 = sadd.s32 %s19, 11
    %s76 = sld [smem:[#allocation5 + %s75]]
    %s77 = scalar_lea.vmem %s2, %s76
    %v78 = vld [vmem:[%s77] sm:$0x1]
    %79 = vst.msk [vmem:[#allocation3 + $0x2] sm:$0x1] %vm23, %v78
    %s80 = sadd.s32 %s19, 12
    %s81 = sld [smem:[#allocation5 + %s80]]
    %s82 = scalar_lea.vmem %s2, %s81
    %v83 = vld [vmem:[%s82] sm:$0x1]
    %84 = vst.msk [vmem:[#allocation3 + $0xa] sm:$0x1] %vm23, %v83
    %s85 = sadd.s32 %s19, 13
    %s86 = sld [smem:[#allocation5 + %s85]]
    %s87 = scalar_lea.vmem %s2, %s86
    %v88 = vld [vmem:[%s87] sm:$0x1]
    %89 = vst.msk [vmem:[#allocation3 + $0x12] sm:$0x1] %vm23, %v88
    %s90 = sadd.s32 %s19, 14
    %s91 = sld [smem:[#allocation5 + %s90]]
    %s92 = scalar_lea.vmem %s2, %s91
    %v93 = vld [vmem:[%s92] sm:$0x1]
    %94 = vst.msk [vmem:[#allocation3 + $0x1a] sm:$0x1] %vm23, %v93
    %s95 = sadd.s32 %s19, 15
    %s96 = sld [smem:[#allocation5 + %s95]]
    %s97 = scalar_lea.vmem %s1, %s96
    %v98 = vld [vmem:[%s97] sm:$0x1]
    %99 = vst.msk [vmem:[#allocation2 + $0x3] sm:$0x1] %vm23, %v98
    %s100 = sadd.s32 %s19, 16
    %s101 = sld [smem:[#allocation5 + %s100]]
    %s102 = scalar_lea.vmem %s2, %s101
    %v103 = vld [vmem:[%s102] sm:$0x1]
    %104 = vst.msk [vmem:[#allocation3 + $0x3] sm:$0x1] %vm23, %v103
    %s105 = sadd.s32 %s19, 17
    %s106 = sld [smem:[#allocation5 + %s105]]
    %s107 = scalar_lea.vmem %s2, %s106
    %v108 = vld [vmem:[%s107] sm:$0x1]
    %109 = vst.msk [vmem:[#allocation3 + $0xb] sm:$0x1] %vm23, %v108
    %s110 = sadd.s32 %s19, 18
    %s111 = sld [smem:[#allocation5 + %s110]]
    %s112 = scalar_lea.vmem %s2, %s111
    %v113 = vld [vmem:[%s112] sm:$0x1]
    %114 = vst.msk [vmem:[#allocation3 + $0x13] sm:$0x1] %vm23, %v113
    %s115 = sadd.s32 %s19, 19
    %s116 = sld [smem:[#allocation5 + %s115]]
    %s117 = scalar_lea.vmem %s2, %s116
    %v118 = vld [vmem:[%s117] sm:$0x1]
    %119 = vst.msk [vmem:[#allocation3 + $0x1b] sm:$0x1] %vm23, %v118
    %s120 = sadd.s32 %s19, 20
    %s121 = sld [smem:[#allocation5 + %s120]]
    %s122 = scalar_lea.vmem %s1, %s121
    %v123 = vld [vmem:[%s122] sm:$0x1]
    %124 = vst.msk [vmem:[#allocation2 + $0x4] sm:$0x1] %vm23, %v123
    %s125 = sadd.s32 %s19, 21
    %s126 = sld [smem:[#allocation5 + %s125]]
    %s127 = scalar_lea.vmem %s2, %s126
    %v128 = vld [vmem:[%s127] sm:$0x1]
    %129 = vst.msk [vmem:[#allocation3 + $0x4] sm:$0x1] %vm23, %v128
    %s130 = sadd.s32 %s19, 22
    %s131 = sld [smem:[#allocation5 + %s130]]
    %s132 = scalar_lea.vmem %s2, %s131
    %v133 = vld [vmem:[%s132] sm:$0x1]
    %134 = vst.msk [vmem:[#allocation3 + $0xc] sm:$0x1] %vm23, %v133
    %s135 = sadd.s32 %s19, 23
    %s136 = sld [smem:[#allocation5 + %s135]]
    %s137 = scalar_lea.vmem %s2, %s136
    %v138 = vld [vmem:[%s137] sm:$0x1]
    %139 = vst.msk [vmem:[#allocation3 + $0x14] sm:$0x1] %vm23, %v138
    %s140 = sadd.s32 %s19, 24
    %s141 = sld [smem:[#allocation5 + %s140]]
    %s142 = scalar_lea.vmem %s2, %s141
    %v143 = vld [vmem:[%s142] sm:$0x1]
    %144 = vst.msk [vmem:[#allocation3 + $0x1c] sm:$0x1] %vm23, %v143
    %s145 = sadd.s32 %s19, 25
    %s146 = sld [smem:[#allocation5 + %s145]]
    %s147 = scalar_lea.vmem %s1, %s146
    %v148 = vld [vmem:[%s147] sm:$0x1]
    %149 = vst.msk [vmem:[#allocation2 + $0x5] sm:$0x1] %vm23, %v148
    %s150 = sadd.s32 %s19, 26
    %s151 = sld [smem:[#allocation5 + %s150]]
    %s152 = scalar_lea.vmem %s2, %s151
    %v153 = vld [vmem:[%s152] sm:$0x1]
    %154 = vst.msk [vmem:[#allocation3 + $0x5] sm:$0x1] %vm23, %v153
    %s155 = sadd.s32 %s19, 27
    %s156 = sld [smem:[#allocation5 + %s155]]
    %s157 = scalar_lea.vmem %s2, %s156
    %v158 = vld [vmem:[%s157] sm:$0x1]
    %159 = vst.msk [vmem:[#allocation3 + $0xd] sm:$0x1] %vm23, %v158
    %s160 = sadd.s32 %s19, 28
    %s161 = sld [smem:[#allocation5 + %s160]]
    %s162 = scalar_lea.vmem %s2, %s161
    %v163 = vld [vmem:[%s162] sm:$0x1]
    %164 = vst.msk [vmem:[#allocation3 + $0x15] sm:$0x1] %vm23, %v163
    %s165 = sadd.s32 %s19, 29
    %s166 = sld [smem:[#allocation5 + %s165]]
    %s167 = scalar_lea.vmem %s2, %s166
    %v168 = vld [vmem:[%s167] sm:$0x1]
    %169 = vst.msk [vmem:[#allocation3 + $0x1d] sm:$0x1] %vm23, %v168
    %s170 = sadd.s32 %s19, 30
    %s171 = sld [smem:[#allocation5 + %s170]]
    %s172 = scalar_lea.vmem %s1, %s171
    %v173 = vld [vmem:[%s172] sm:$0x1]
    %174 = vst.msk [vmem:[#allocation2 + $0x6] sm:$0x1] %vm23, %v173
    %s175 = sadd.s32 %s19, 31
    %s176 = sld [smem:[#allocation5 + %s175]]
    %s177 = scalar_lea.vmem %s2, %s176
    %v178 = vld [vmem:[%s177] sm:$0x1]
    %179 = vst.msk [vmem:[#allocation3 + $0x6] sm:$0x1] %vm23, %v178
    %s180 = sadd.s32 %s19, 32
    %s181 = sld [smem:[#allocation5 + %s180]]
    %s182 = scalar_lea.vmem %s2, %s181
    %v183 = vld [vmem:[%s182] sm:$0x1]
    %184 = vst.msk [vmem:[#allocation3 + $0xe] sm:$0x1] %vm23, %v183
    %s185 = sadd.s32 %s19, 33
    %s186 = sld [smem:[#allocation5 + %s185]]
    %s187 = scalar_lea.vmem %s2, %s186
    %v188 = vld [vmem:[%s187] sm:$0x1]
    %189 = vst.msk [vmem:[#allocation3 + $0x16] sm:$0x1] %vm23, %v188
    %s190 = sadd.s32 %s19, 34
    %s191 = sld [smem:[#allocation5 + %s190]]
    %s192 = scalar_lea.vmem %s2, %s191
    %v193 = vld [vmem:[%s192] sm:$0x1]
    %194 = vst.msk [vmem:[#allocation3 + $0x1e] sm:$0x1] %vm23, %v193
    %s195 = sadd.s32 %s19, 35
    %s196 = sld [smem:[#allocation5 + %s195]]
    %s197 = scalar_lea.vmem %s1, %s196
    %v198 = vld [vmem:[%s197] sm:$0x1]
    %199 = vst.msk [vmem:[#allocation2 + $0x7] sm:$0x1] %vm23, %v198
    %s200 = sadd.s32 %s19, 36
    %s201 = sld [smem:[#allocation5 + %s200]]
    %s202 = scalar_lea.vmem %s2, %s201
    %v203 = vld [vmem:[%s202] sm:$0x1]
    %204 = vst.msk [vmem:[#allocation3 + $0x7] sm:$0x1] %vm23, %v203
    %s205 = sadd.s32 %s19, 37
    %s206 = sld [smem:[#allocation5 + %s205]]
    %s207 = scalar_lea.vmem %s2, %s206
    %v208 = vld [vmem:[%s207] sm:$0x1]
    %209 = vst.msk [vmem:[#allocation3 + $0xf] sm:$0x1] %vm23, %v208
    %s210 = sadd.s32 %s19, 38
    %s211 = sld [smem:[#allocation5 + %s210]]
    %s212 = scalar_lea.vmem %s2, %s211
    %v213 = vld [vmem:[%s212] sm:$0x1]
    %214 = vst.msk [vmem:[#allocation3 + $0x17] sm:$0x1] %vm23, %v213
    %s215 = sadd.s32 %s19, 39
    %s216 = sld [smem:[#allocation5 + %s215]]
    %s217 = scalar_lea.vmem %s2, %s216
    %v218 = vld [vmem:[%s217] sm:$0x1]
    %219 = vst.msk [vmem:[#allocation3 + $0x1f] sm:$0x1] %vm23, %v218
    %v220 = vld [vmem:[#allocation2] sm:$0xff]
    %v221 = vld [vmem:[#allocation3] sm:$0xff]
    %v222 = vld [vmem:[#allocation3 + $0x8] sm:$0xff]
    %v223 = vld [vmem:[#allocation3 + $0x10] sm:$0xff]
    %v224 = vld [vmem:[#allocation3 + $0x18] sm:$0xff]
    %v225 = vmul.f32 %v221, %v220
    %v226 = vmul.f32 %v222, %v220
    %v227 = vmul.f32 %v223, %v220
    %v228 = vmul.f32 %v224, %v220
    %vm229 = vcmask 261120
    %v230 = vsel %vm229, %v225, 0.0
    %231 = vadd.xlane.f32.xlu0 %v230
    %v232 = vpop.xlane.xlu0 %231
    %v233 = vsel %vm229, %v226, 0.0
    %234 = vadd.xlane.f32.xlu0 %v233
    %v235 = vpop.xlane.xlu0 %234
    %v236 = vsel %vm229, %v227, 0.0
    %237 = vadd.xlane.f32.xlu0 %v236
    %v238 = vpop.xlane.xlu0 %237
    %v239 = vsel %vm229, %v228, 0.0
    %240 = vadd.xlane.f32.xlu0 %v239
    %v241 = vpop.xlane.xlu0 %240
    %v242 = vsub.f32 0.0, %v232
    %v243 = vsub.f32 0.0, %v235
    %v244 = vsub.f32 0.0, %v238
    %v245 = vsub.f32 0.0, %v241
    %v246 = vmin.f32 %v242, 0.0
    %v247 = vmin.f32 %v243, 0.0
    %v248 = vmin.f32 %v244, 0.0
    %v249 = vmin.f32 %v245, 0.0
    %v250 = vand.u32 2147483647, %v242
    %v251 = vand.u32 2147483647, %v243
    %v252 = vand.u32 2147483647, %v244
    %v253 = vand.u32 2147483647, %v245
    %v254 = vsub.f32 0.0, %v250
    %v255 = vsub.f32 0.0, %v251
    %v256 = vsub.f32 0.0, %v252
    %v257 = vsub.f32 0.0, %v253
    %v258 = vmul.f32 %v254, 1.442695
    %v259 = vpow.pop %v258
    %v260 = vmul.f32 %v255, 1.442695
    %v261 = vpow.pop %v260
    %v262 = vmul.f32 %v256, 1.442695
    %v263 = vpow.pop %v262
    %v264 = vmul.f32 %v257, 1.442695
    %v265 = vpow.pop %v264
    %v266 = vadd.f32 %v259, 1.0
    %v267 = vlog2.pop %v266
    %v268 = vmul.f32 %v267, 0.6931472
    %v269 = vmul.f32 -0.5, %v259
    %v270 = vadd.f32 %v269, 1.0
    %v271 = vmul.f32 %v270, %v259
    %v272 = vand.u32 2147483647, %v259
    %vm273 = vcmp.lt.f32.partialorder %v272, 0.0004427343
    %v274 = vsel %vm273, %v271, %v268
    %v275 = vadd.f32 %v261, 1.0
    %v276 = vlog2.pop %v275
    %v277 = vmul.f32 %v276, 0.6931472
    %v278 = vmul.f32 -0.5, %v261
    %v279 = vadd.f32 %v278, 1.0
    %v280 = vmul.f32 %v279, %v261
    %v281 = vand.u32 2147483647, %v261
    %vm282 = vcmp.lt.f32.partialorder %v281, 0.0004427343
    %v283 = vsel %vm282, %v280, %v277
    %v284 = vadd.f32 %v263, 1.0
    %v285 = vlog2.pop %v284
    %v286 = vmul.f32 %v285, 0.6931472
    %v287 = vmul.f32 -0.5, %v263
    %v288 = vadd.f32 %v287, 1.0
    %v289 = vmul.f32 %v288, %v263
    %v290 = vand.u32 2147483647, %v263
    %vm291 = vcmp.lt.f32.partialorder %v290, 0.0004427343
    %v292 = vsel %vm291, %v289, %v286
    %v293 = vadd.f32 %v265, 1.0
    %v294 = vlog2.pop %v293
    %v295 = vmul.f32 %v294, 0.6931472
    %v296 = vmul.f32 -0.5, %v265
    %v297 = vadd.f32 %v296, 1.0
    %v298 = vmul.f32 %v297, %v265
    %v299 = vand.u32 2147483647, %v265
    %vm300 = vcmp.lt.f32.partialorder %v299, 0.0004427343
    %v301 = vsel %vm300, %v298, %v295
    %v302 = vsub.f32 %v246, %v274
    %v303 = vsub.f32 %v247, %v283
    %v304 = vsub.f32 %v248, %v292
    %v305 = vsub.f32 %v249, %v301
    %v310 = vlaneseq
    %v311 = vand.u32 %v310, 127
    %v312 = vlaneseq
    %v313 = vshrl.u32 %v312, 7
    %v314 = vsub.s32 %v311, %v313
    %v315 = vrot.slane %v302, %v314
    %v316 = vlaneseq
    %v317 = vshrl.u32 %v316, 7
    %v318 = vsub.s32 %v311, %v317
    %v319 = vrot.slane %v303, %v318
    %v320 = vlaneseq
    %v321 = vshrl.u32 %v320, 7
    %v322 = vsub.s32 %v311, %v321
    %v323 = vrot.slane %v304, %v322
    %v324 = vlaneseq
    %v325 = vshrl.u32 %v324, 7
    %v326 = vsub.s32 %v311, %v325
    %v327 = vrot.slane %v305, %v326
    %vm328 = vcmask 1041409
    %v329 = vsel %vm328, %v319, %v315
    %vm330 = vcmask 1042434
    %v331 = vsel %vm330, %v323, %v329
    %vm332 = vcmask 1043459
    %v333 = vsel %vm332, %v327, %v331
    %vm335 = vcmask 60416
    %336 = vst.msk [vmem:[#allocation6] sm:$0xf] %vm335, %v333
    // Predicated region
    $region10: #{tpu_custom_call.1} parent=1 // pred_check
      _
    $region11: #{tpu_custom_call.1} parent=1 // pred_check_branch
      %338 = sbr.rel (0) target = $region13
    $region12: #{tpu_custom_call.1} parent=1 // pred_region
      %s340 = ssub.s32 64, 64
      %341 = vsyncadd [#allocation7], %s340
      %s343 = sshll.u32 [#allocation6], 4
      %s344 = int_to_ptr.vmem [resolvable:$true] %s343
      %346 = dma.vmem_to_hbm [thread:$0]  %s344, 64, %s3, [#allocation7]
    $region13: #{tpu_custom_call.1} parent=1 // pred_fallthru
      _
    // Predicated region
    $region14: #{tpu_custom_call.1} parent=1 // pred_check
      _
    $region15: #{tpu_custom_call.1} parent=1 // pred_check_branch
      %348 = sbr.rel (0) target = $region17
    $region16: #{tpu_custom_call.1} parent=1 // pred_region
      %349 = dma.done [#allocation7], 64
    $region17: #{tpu_custom_call.1} parent=1 // pred_fallthru
      _
    %350 = vsyncpa [#allocation7], 1

</llo_original>
